<compile_context>
chip_gen: v5e
topology: v5e:2x2
jax: 0.10.0
libtpu: 0.0.40
codegen_flags: <defaults>
</compile_context>

<pallas_src>
import jax
import jax.numpy as jnp
from jax.experimental import pallas as pl
from jax.experimental.pallas import tpu as pltpu


def _mlp_softmax_kernel(x_ref, w1_ref, b1_ref, w2_ref, b2_ref, w3_ref, b3_ref, o_ref):
    # Feature-major: x is (6, TB), batch on the lane axis.
    x = x_ref[...].astype(jnp.bfloat16)
    w1 = w1_ref[...].astype(jnp.bfloat16)
    w2 = w2_ref[...].astype(jnp.bfloat16)
    w3 = w3_ref[...].astype(jnp.bfloat16)

    # layer1 + ReLU (dropout skipped: training=False)
    h1 = jnp.dot(w1, x, preferred_element_type=jnp.float32) + b1_ref[...]
    h1 = jnp.maximum(h1, 0.0).astype(jnp.bfloat16)                 # (16, TB)

    # layer2 + ReLU (dropout skipped: training=False)
    h2 = jnp.dot(w2, h1, preferred_element_type=jnp.float32) + b2_ref[...]
    h2 = jnp.maximum(h2, 0.0).astype(jnp.bfloat16)                 # (16, TB)

    # output layer (f32 logits)
    logits = jnp.dot(w3, h2, preferred_element_type=jnp.float32) + b3_ref[...]  # (4, TB)

    # softmax over the class axis (axis 0 here == PyTorch dim=1).
    # Exact divide so the probabilities sum to 1 to f32 precision.
    m = jnp.max(logits, axis=0, keepdims=True)
    e = jnp.exp(logits - m)
    denom = jnp.sum(e, axis=0, keepdims=True)
    o_ref[...] = e / denom


def health_diagnosis_forward(x, params, *, block_b=32768):
    """x: (B, 6) float32.
    params: w1 (16,6), b1 (16,1), w2 (16,16), b2 (16,1), w3 (4,16), b3 (4,1)
    (PyTorch nn.Linear (out, in) weight layout). Returns (B, 4) softmax probs.

    block_b must be a multiple of 128 (default 32768; use ~16384 on v5e).
    """
    B = x.shape[0]
    xt = jnp.transpose(x).astype(jnp.float32)       # (6, B): lane-dense, batch on lanes

    if B <= block_b:
        tb = B                                       # single block == full array dims
    else:
        tb = block_b                                 # multiple of 128 by construction
    grid = (pl.cdiv(B, tb),)                         # partial last block handled by Pallas

    const = lambda i: (0, 0)                         # weights/biases: resident, DMA'd once

    n_param = 16 * 6 + 16 + 16 * 16 + 16 + 4 * 16 + 4
    cost = pl.CostEstimate(
        flops=2 * B * (6 * 16 + 16 * 16 + 16 * 4),
        transcendentals=4 * B,                       # 4 exps per column
        bytes_accessed=B * (6 + 4) * 4 + 4 * n_param,
    )

    out_t = pl.pallas_call(
        _mlp_softmax_kernel,
        out_shape=jax.ShapeDtypeStruct((4, B), jnp.float32),
        grid=grid,
        in_specs=[
            pl.BlockSpec((6, tb), lambda i: (0, i)),    # x tile: batch-tiled, lane-dense
            pl.BlockSpec((16, 6), const),               # w1
            pl.BlockSpec((16, 1), const),               # b1
            pl.BlockSpec((16, 16), const),              # w2
            pl.BlockSpec((16, 1), const),               # b2
            pl.BlockSpec((4, 16), const),               # w3
            pl.BlockSpec((4, 1), const),                # b3
        ],
        out_specs=pl.BlockSpec((4, tb), lambda i: (0, i)),
        compiler_params=pltpu.CompilerParams(
            dimension_semantics=("parallel",),          # megacore sharding on v7x
            vmem_limit_bytes=48 * 1024 * 1024,          # cover 32K-wide double-buffered tiles
        ),
        cost_estimate=cost,
    )(
        xt,
        params["w1"], params["b1"],
        params["w2"], params["b2"],
        params["w3"], params["b3"],
    )

    return jnp.transpose(out_t)                      # (B, 4)


def init_params(key):
    """Deterministic init mimicking PyTorch nn.Linear (uniform +/- 1/sqrt(fan_in)),
    stored in PyTorch (out, in) layout; biases (out, 1)."""
    def linear(key, fan_in, fan_out):
        kw, kb = jax.random.split(key)
        bound = 1.0 / jnp.sqrt(float(fan_in))
        w = jax.random.uniform(kw, (fan_out, fan_in), jnp.float32, -bound, bound)
        b = jax.random.uniform(kb, (fan_out, 1), jnp.float32, -bound, bound)
        return w, b

    k1, k2, k3 = jax.random.split(key, 3)
    w1, b1 = linear(k1, 6, 16)
    w2, b2 = linear(k2, 16, 16)
    w3, b3 = linear(k3, 16, 4)
    return {"w1": w1, "b1": b1, "w2": w2, "b2": b2, "w3": w3, "b3": b3}


def _reference(x, p):
    # Pure-f32 reference of the PyTorch forward (inference: dropout = identity).
    h1 = jnp.maximum(x @ p["w1"].T + p["b1"][:, 0], 0.0)
    h2 = jnp.maximum(h1 @ p["w2"].T + p["b2"][:, 0], 0.0)
    logits = h2 @ p["w3"].T + p["b3"][:, 0]
    return jax.nn.softmax(logits, axis=1)


if __name__ == "__main__":
    key = jax.random.PRNGKey(0)
    kp, kx = jax.random.split(key)

    params = init_params(kp)

    # small primary case: batch=8, 6 health features
    x = jax.random.normal(kx, (8, 6), dtype=jnp.float32)
    out = jax.block_until_ready(health_diagnosis_forward(x, params))

    expected = _reference(x, params)
    assert out.shape == (8, 4)
    # bf16 MXU operands (f32 accumulate) vs f32 reference -> 2e-2 tolerance
    assert jnp.allclose(out, expected, atol=2e-2, rtol=2e-2)
    # exact divide in the kernel -> rows sum to 1 to f32 precision
    assert jnp.allclose(jnp.sum(out, axis=1), 1.0, atol=1e-4)

    # exercise the multi-block grid + partial-last-block path
    # (B=300, tile=128 -> grid of 3, last block 44 real columns)
    x2 = jax.random.normal(jax.random.PRNGKey(1), (300, 6), dtype=jnp.float32)
    out2 = jax.block_until_ready(health_diagnosis_forward(x2, params, block_b=128))
    exp2 = _reference(x2, params)
    assert out2.shape == (300, 4)
    assert jnp.allclose(out2, exp2, atol=2e-2, rtol=2e-2)
    assert jnp.allclose(jnp.sum(out2, axis=1), 1.0, atol=1e-4)

    print("KERNEL_OK")
</pallas_src>

<mosaic_0001>
module attributes {stable_mosaic.version = 11 : i64} {
  func.func @_mlp_softmax_kernel(%arg0: i32, %arg1: memref<6x8xf32, #tpu.memory_space<vmem>>, %arg2: memref<16x6xf32, #tpu.memory_space<vmem>>, %arg3: memref<16x1xf32, #tpu.memory_space<vmem>>, %arg4: memref<16x16xf32, #tpu.memory_space<vmem>>, %arg5: memref<16x1xf32, #tpu.memory_space<vmem>>, %arg6: memref<4x16xf32, #tpu.memory_space<vmem>>, %arg7: memref<4x1xf32, #tpu.memory_space<vmem>>, %arg8: memref<4x8xf32, #tpu.memory_space<vmem>>) attributes {dimension_semantics = [#tpu.dimension_semantics<parallel>], iteration_bounds = array<i64: 1>, scalar_prefetch = 0 : i64, scratch_operands = 0 : i64, tpu.core_type = #tpu.core_type<tc>, window_params = [{transform_indices = @transform_0, window_bounds = array<i64: 6, 8>}, {pipeline_mode = #tpu.pipeline_mode<synchronous>, transform_indices = @transform_1, window_bounds = array<i64: 16, 6>}, {pipeline_mode = #tpu.pipeline_mode<synchronous>, transform_indices = @transform_2, window_bounds = array<i64: 16, 1>}, {pipeline_mode = #tpu.pipeline_mode<synchronous>, transform_indices = @transform_3, window_bounds = array<i64: 16, 16>}, {pipeline_mode = #tpu.pipeline_mode<synchronous>, transform_indices = @transform_4, window_bounds = array<i64: 16, 1>}, {pipeline_mode = #tpu.pipeline_mode<synchronous>, transform_indices = @transform_5, window_bounds = array<i64: 4, 16>}, {pipeline_mode = #tpu.pipeline_mode<synchronous>, transform_indices = @transform_6, window_bounds = array<i64: 4, 1>}, {transform_indices = @transform_7, window_bounds = array<i64: 4, 8>}]} {
    %c0 = arith.constant 0 : index
    %c0_0 = arith.constant 0 : index
    %0 = vector.load %arg1[%c0, %c0_0] : memref<6x8xf32, #tpu.memory_space<vmem>>, vector<6x8xf32>
    %1 = arith.truncf %0 : vector<6x8xf32> to vector<6x8xbf16>
    %c0_1 = arith.constant 0 : index
    %c0_2 = arith.constant 0 : index
    %2 = vector.load %arg2[%c0_1, %c0_2] : memref<16x6xf32, #tpu.memory_space<vmem>>, vector<16x6xf32>
    %3 = arith.truncf %2 : vector<16x6xf32> to vector<16x6xbf16>
    %c0_3 = arith.constant 0 : index
    %c0_4 = arith.constant 0 : index
    %4 = vector.load %arg4[%c0_3, %c0_4] : memref<16x16xf32, #tpu.memory_space<vmem>>, vector<16x16xf32>
    %5 = arith.truncf %4 : vector<16x16xf32> to vector<16x16xbf16>
    %c0_5 = arith.constant 0 : index
    %c0_6 = arith.constant 0 : index
    %6 = vector.load %arg6[%c0_5, %c0_6] : memref<4x16xf32, #tpu.memory_space<vmem>>, vector<4x16xf32>
    %7 = arith.truncf %6 : vector<4x16xf32> to vector<4x16xbf16>
    %cst = arith.constant dense<0.000000e+00> : vector<16x8xf32>
    %8 = tpu.matmul %3, %1, %cst {dimension_numbers = #tpu.dot_dimension_numbers<[1], [0], [0], [1], [0, 0, 1, 1], [], []>} : vector<16x6xbf16>, vector<6x8xbf16>, vector<16x8xf32> -> vector<16x8xf32>
    %c0_7 = arith.constant 0 : index
    %c0_8 = arith.constant 0 : index
    %9 = vector.load %arg3[%c0_7, %c0_8] : memref<16x1xf32, #tpu.memory_space<vmem>>, vector<16x1xf32>
    %10 = vector.broadcast %9 : vector<16x1xf32> to vector<16x8xf32>
    %11 = arith.addf %8, %10 : vector<16x8xf32>
    %cst_9 = arith.constant 0.000000e+00 : f32
    %12 = vector.broadcast %cst_9 : f32 to vector<16x8xf32>
    %13 = arith.maximumf %11, %12 : vector<16x8xf32>
    %14 = arith.truncf %13 : vector<16x8xf32> to vector<16x8xbf16>
    %cst_10 = arith.constant dense<0.000000e+00> : vector<16x8xf32>
    %15 = tpu.matmul %5, %14, %cst_10 {dimension_numbers = #tpu.dot_dimension_numbers<[1], [0], [0], [1], [0, 0, 1, 1], [], []>} : vector<16x16xbf16>, vector<16x8xbf16>, vector<16x8xf32> -> vector<16x8xf32>
    %c0_11 = arith.constant 0 : index
    %c0_12 = arith.constant 0 : index
    %16 = vector.load %arg5[%c0_11, %c0_12] : memref<16x1xf32, #tpu.memory_space<vmem>>, vector<16x1xf32>
    %17 = vector.broadcast %16 : vector<16x1xf32> to vector<16x8xf32>
    %18 = arith.addf %15, %17 : vector<16x8xf32>
    %cst_13 = arith.constant 0.000000e+00 : f32
    %19 = vector.broadcast %cst_13 : f32 to vector<16x8xf32>
    %20 = arith.maximumf %18, %19 : vector<16x8xf32>
    %21 = arith.truncf %20 : vector<16x8xf32> to vector<16x8xbf16>
    %cst_14 = arith.constant dense<0.000000e+00> : vector<4x8xf32>
    %22 = tpu.matmul %7, %21, %cst_14 {dimension_numbers = #tpu.dot_dimension_numbers<[1], [0], [0], [1], [0, 0, 1, 1], [], []>} : vector<4x16xbf16>, vector<16x8xbf16>, vector<4x8xf32> -> vector<4x8xf32>
    %c0_15 = arith.constant 0 : index
    %c0_16 = arith.constant 0 : index
    %23 = vector.load %arg7[%c0_15, %c0_16] : memref<4x1xf32, #tpu.memory_space<vmem>>, vector<4x1xf32>
    %24 = vector.broadcast %23 : vector<4x1xf32> to vector<4x8xf32>
    %25 = arith.addf %22, %24 : vector<4x8xf32>
    %cst_17 = arith.constant dense<0xFF800000> : vector<8xf32>
    %26 = vector.multi_reduction <maximumf>, %25, %cst_17 [0] : vector<4x8xf32> to vector<8xf32>
    %27 = vector.shape_cast %26 : vector<8xf32> to vector<1x8xf32>
    %28 = vector.broadcast %27 : vector<1x8xf32> to vector<4x8xf32>
    %29 = arith.subf %25, %28 : vector<4x8xf32>
    %30 = math.exp %29 : vector<4x8xf32>
    %cst_18 = arith.constant dense<0.000000e+00> : vector<8xf32>
    %31 = vector.multi_reduction <add>, %30, %cst_18 [0] : vector<4x8xf32> to vector<8xf32>
    %32 = vector.shape_cast %31 : vector<8xf32> to vector<1x8xf32>
    %33 = vector.broadcast %32 : vector<1x8xf32> to vector<4x8xf32>
    %34 = arith.divf %30, %33 : vector<4x8xf32>
    %c0_19 = arith.constant 0 : index
    %c0_20 = arith.constant 0 : index
    %35 = vector.load %arg8[%c0_19, %c0_20] : memref<4x8xf32, #tpu.memory_space<vmem>>, vector<4x8xf32>
    tpu.vector_store %arg8[%c0_19, %c0_20], %34 {strides = array<i32>} : memref<4x8xf32, #tpu.memory_space<vmem>>, vector<4x8xf32>,
    return
  }
  func.func @transform_0(%arg0: i32) -> (i32, i32) {
    %c0_i32 = arith.constant 0 : i32
    %c0_i32_0 = arith.constant 0 : i32
    return %c0_i32, %arg0 : i32, i32
  }
  func.func @transform_1(%arg0: i32) -> (i32, i32) {
    %c0_i32 = arith.constant 0 : i32
    %c0_i32_0 = arith.constant 0 : i32
    %c0_i32_1 = arith.constant 0 : i32
    return %c0_i32, %c0_i32_0 : i32, i32
  }
  func.func @transform_2(%arg0: i32) -> (i32, i32) {
    %c0_i32 = arith.constant 0 : i32
    %c0_i32_0 = arith.constant 0 : i32
    %c0_i32_1 = arith.constant 0 : i32
    return %c0_i32, %c0_i32_0 : i32, i32
  }
  func.func @transform_3(%arg0: i32) -> (i32, i32) {
    %c0_i32 = arith.constant 0 : i32
    %c0_i32_0 = arith.constant 0 : i32
    %c0_i32_1 = arith.constant 0 : i32
    return %c0_i32, %c0_i32_0 : i32, i32
  }
  func.func @transform_4(%arg0: i32) -> (i32, i32) {
    %c0_i32 = arith.constant 0 : i32
    %c0_i32_0 = arith.constant 0 : i32
    %c0_i32_1 = arith.constant 0 : i32
    return %c0_i32, %c0_i32_0 : i32, i32
  }
  func.func @transform_5(%arg0: i32) -> (i32, i32) {
    %c0_i32 = arith.constant 0 : i32
    %c0_i32_0 = arith.constant 0 : i32
    %c0_i32_1 = arith.constant 0 : i32
    return %c0_i32, %c0_i32_0 : i32, i32
  }
  func.func @transform_6(%arg0: i32) -> (i32, i32) {
    %c0_i32 = arith.constant 0 : i32
    %c0_i32_0 = arith.constant 0 : i32
    %c0_i32_1 = arith.constant 0 : i32
    return %c0_i32, %c0_i32_0 : i32, i32
  }
  func.func @transform_7(%arg0: i32) -> (i32, i32) {
    %c0_i32 = arith.constant 0 : i32
    %c0_i32_0 = arith.constant 0 : i32
    return %c0_i32, %arg0 : i32, i32
  }
}

</mosaic_0001>

<llo_original>
// kernel: tpu_custom_call.1
$region0: #{tpu_custom_call.1}
  #allocation0 [shape = 'u32[]', space=smem, size = 0x4, offset = 0x4, fixed_abs, tag = 'smem constant byte address 0x4 - core index']
  #allocation1 [shape = 'u32[72,128]{1,0:T(1,128)}', space=vmem, size = 0x9000, scoped, tag = 'internal scratch']
  %s0 = inlined_call_operand.vmem [shape: f32[6,8], index: 0, kind: input, shape index: {}]
  %s1 = inlined_call_operand.vmem [shape: f32[16,6], index: 1, kind: input, shape index: {}]
  %s2 = inlined_call_operand.vmem [shape: f32[16,1], index: 2, kind: input, shape index: {}]
  %s3 = inlined_call_operand.vmem [shape: f32[16,16], index: 3, kind: input, shape index: {}]
  %s4 = inlined_call_operand.vmem [shape: f32[16,1], index: 4, kind: input, shape index: {}]
  %s5 = inlined_call_operand.vmem [shape: f32[4,16], index: 5, kind: input, shape index: {}]
  %s6 = inlined_call_operand.vmem [shape: f32[4,1], index: 6, kind: input, shape index: {}]
  %s7 = inlined_call_operand.hbm [shape: f32[4,8], index: 7, kind: output, shape index: {}]
  %s8 = sld [smem:[#allocation0]]
  $region38: #{tpu_custom_call.1} parent=0
    _
  %s10 = ssub.s32 1, %s8
  %s11 = scalar_select 0, %s10, %s8
  $region1: #{tpu_custom_call.1} parent=0
    #allocation2 [shape = 'u8[2048]{0}', space=vmem, size = 0x800, scoped, tag = 'output window, operand 0, single buffered']
    #allocation3 [shape = 's32[1]{0}', space=sflag, size = 0x4, scoped, tag = 'scoped memory for tpu_custom_call.1']
    %12 = vsyncpa [#allocation3], 0
    // Predicated region
    $region2: #{tpu_custom_call.1} parent=1 // pred_check
      _
    $region3: #{tpu_custom_call.1} parent=1 // pred_check_branch
      %14 = sbr.rel (0) target = $region5
    $region4: #{tpu_custom_call.1} parent=1 // pred_region
      _
    $region5: #{tpu_custom_call.1} parent=1 // pred_fallthru
      _
    // Predicated region
    $region6: #{tpu_custom_call.1} parent=1 // pred_check
      _
    $region7: #{tpu_custom_call.1} parent=1 // pred_check_branch
      %16 = sbr.rel (0) target = $region9
    $region8: #{tpu_custom_call.1} parent=1 // pred_region
      _
    $region9: #{tpu_custom_call.1} parent=1 // pred_fallthru
      _
    // Predicated region
    $region10: #{tpu_custom_call.1} parent=1 // pred_check
      _
    $region11: #{tpu_custom_call.1} parent=1 // pred_check_branch
      %18 = sbr.rel (0) target = $region13
    $region12: #{tpu_custom_call.1} parent=1 // pred_region
      _
    $region13: #{tpu_custom_call.1} parent=1 // pred_fallthru
      _
    // Predicated region
    $region14: #{tpu_custom_call.1} parent=1 // pred_check
      _
    $region15: #{tpu_custom_call.1} parent=1 // pred_check_branch
      %20 = sbr.rel (0) target = $region17
    $region16: #{tpu_custom_call.1} parent=1 // pred_region
      _
    $region17: #{tpu_custom_call.1} parent=1 // pred_fallthru
      _
    // Predicated region
    $region18: #{tpu_custom_call.1} parent=1 // pred_check
      _
    $region19: #{tpu_custom_call.1} parent=1 // pred_check_branch
      %22 = sbr.rel (0) target = $region21
    $region20: #{tpu_custom_call.1} parent=1 // pred_region
      _
    $region21: #{tpu_custom_call.1} parent=1 // pred_fallthru
      _
    // Predicated region
    $region22: #{tpu_custom_call.1} parent=1 // pred_check
      _
    $region23: #{tpu_custom_call.1} parent=1 // pred_check_branch
      %24 = sbr.rel (0) target = $region25
    $region24: #{tpu_custom_call.1} parent=1 // pred_region
      _
    $region25: #{tpu_custom_call.1} parent=1 // pred_fallthru
      _
    // Predicated region
    $region26: #{tpu_custom_call.1} parent=1 // pred_check
      _
    $region27: #{tpu_custom_call.1} parent=1 // pred_check_branch
      %26 = sbr.rel (0) target = $region29
    $region28: #{tpu_custom_call.1} parent=1 // pred_region
      _
    $region29: #{tpu_custom_call.1} parent=1 // pred_fallthru
      _
    %v28 = vld [vmem:[%s0] sm:$0x3f]
    %v29 = vpack.c.bf16 %v28, %v28
    %v30 = vld [vmem:[%s1] sm:$0xff]
    %v31 = vld [vmem:[%s1 + $0x8] sm:$0xff]
    %v32 = vpack.c.bf16 %v31, %v30
    %v33 = vld [vmem:[%s3] sm:$0xff]
    %v34 = vld [vmem:[%s3 + $0x8] sm:$0xff]
    %v35 = vpack.c.bf16 %v34, %v33
    %v36 = vld [vmem:[%s5] sm:$0xf]
    %v37 = vpack.c.bf16 %v36, %v36
    %v38 = vld [vmem:[%s2] sm:$0xff]
    %v39 = vld [vmem:[%s2 + $0x8] sm:$0xff]
    %41 = vset.pattern.permute.xlu0 0
    %42 = vperm.xlu0 %41, %v38
    %v43 = vpop.permute.xlu0 %42
    %46 = vset.pattern.permute.xlu0 0
    %47 = vperm.xlu0 %46, %v39
    %v48 = vpop.permute.xlu0 %47
    %vm50 = vcmask 48128
    %v52 = vsel %vm50, %v32, 0
    %vm54 = vcmask 1042432
    %v56 = vsel %vm54, %v29, 0
    %58 = vmatpush.bf16.msra.mxu0 0
    %59 = vmatpush.bf16.msra.mxu0 0
    %60 = vmatpush.bf16.msra.mxu0 0
    %61 = vmatpush.bf16.msra.mxu0 0
    %62 = vmatpush.bf16.msra.mxu0 0
    %63 = vmatpush.bf16.msra.mxu0 0
    %64 = vmatpush.bf16.msra.mxu0 0
    %65 = vmatpush.bf16.msra.mxu0 %v56
    %66 = vmatmul.bf16.gmra.mxu0 %v52
    %v67 = vpop.f32.mrf.mxu0
    %v68 = vadd.f32 %v43, %v67
    %v69 = vpop.f32.mrf.mxu0
    %v70 = vadd.f32 %v48, %v69
    %71 = vdwg.mxu0
    %v72 = vmax.f32 %v68, 0.0
    %v73 = vmax.f32 %v70, 0.0
    %v74 = vpack.c.bf16 %v73, %v72
    %v75 = vld [vmem:[%s4] sm:$0xff]
    %v76 = vld [vmem:[%s4 + $0x8] sm:$0xff]
    %78 = vset.pattern.permute.xlu0 0
    %79 = vperm.xlu0 %78, %v75
    %v80 = vpop.permute.xlu0 %79
    %83 = vset.pattern.permute.xlu0 0
    %84 = vperm.xlu0 %83, %v76
    %v85 = vpop.permute.xlu0 %84
    %vm87 = vcmask 130048
    %v89 = vsel %vm87, %v35, 0
    %91 = vmatpush.bf16.msra.mxu0 0
    %92 = vmatpush.bf16.msra.mxu0 0
    %93 = vmatpush.bf16.msra.mxu0 0
    %94 = vmatpush.bf16.msra.mxu0 0
    %95 = vmatpush.bf16.msra.mxu0 0
    %96 = vmatpush.bf16.msra.mxu0 0
    %97 = vmatpush.bf16.msra.mxu0 0
    %98 = vmatpush.bf16.msra.mxu0 %v74
    %99 = vmatmul.bf16.gmra.mxu0 %v89
    %v100 = vpop.f32.mrf.mxu0
    %v101 = vadd.f32 %v80, %v100
    %v102 = vpop.f32.mrf.mxu0
    %v103 = vadd.f32 %v85, %v102
    %104 = vdwg.mxu0
    %v105 = vmax.f32 %v101, 0.0
    %v106 = vmax.f32 %v103, 0.0
    %v107 = vpack.c.bf16 %v106, %v105
    %v108 = vld [vmem:[%s6] sm:$0xf]
    %110 = vset.pattern.permute.xlu0 0
    %111 = vperm.xlu0 %110, %v108
    %v112 = vpop.permute.xlu0 %111
    %v115 = vsel %vm87, %v37, 0
    %117 = vmatpush.bf16.msra.mxu0 0
    %118 = vmatpush.bf16.msra.mxu0 0
    %119 = vmatpush.bf16.msra.mxu0 0
    %120 = vmatpush.bf16.msra.mxu0 0
    %121 = vmatpush.bf16.msra.mxu0 0
    %122 = vmatpush.bf16.msra.mxu0 0
    %123 = vmatpush.bf16.msra.mxu0 0
    %124 = vmatpush.bf16.msra.mxu0 %v107
    %125 = vmatmul.bf16.gmra.mxu0 %v115
    %v126 = vpop.f32.mrf.mxu0
    %v127 = vadd.f32 %v112, %v126
    %v128 = vpop.f32.mrf.mxu0
    %129 = vdwg.mxu0
    %vm130 = vcmask 60416
    %v131 = vsel %vm130, %v127, -inf
    %v132 = vrot.slane %v131, 4
    %v133 = vmax.f32 %v131, %v132
    %v134 = vrot.slane %v133, 2
    %v135 = vmax.f32 %v133, %v134
    %v136 = vrot.slane %v135, 1
    %v137 = vmax.f32 %v135, %v136
    %v138 = vsub.f32 %v127, %v137
    %v139 = vmul.f32 %v138, 1.442695
    %v140 = vpow.pop %v139
    %v141 = vsel %vm130, %v140, 0.0
    %v142 = vrot.slane %v141, 4
    %v143 = vadd.f32 %v141, %v142
    %v144 = vrot.slane %v143, 2
    %v145 = vadd.f32 %v143, %v144
    %v146 = vrot.slane %v145, 1
    %v147 = vadd.f32 %v145, %v146
    %v148 = vrcp.pop %v147
    %v149 = vmul.f32 %v147, %v148
    %v150 = vsub.f32 1.0, %v149
    %v151 = vmul.f32 %v148, %v150
    %v152 = vadd.f32 %v148, %v151
    %vm153 = vweird.f32 %v147
    %vm154 = vweird.f32 %v148
    %vm155 = vmor %vm153, %vm154
    %v156 = vsel %vm155, %v148, %v152
    %v157 = vand.u32 2147483647, %v147
    %vm158 = vcmp.eq.f32.partialorder %v157, 8.507059e+37
    %v159 = vand.u32 %v147, 2147483648
    %v160 = vor.u32 1.1754944e-38, %v159
    %v161 = vsel %vm158, %v160, %v156
    %v162 = vmul.f32 %v140, %v161
    %163 = vst.msk [vmem:[#allocation2] sm:$0xf] %vm130, %v162
    // Predicated region
    $region30: #{tpu_custom_call.1} parent=1 // pred_check
      _
    $region31: #{tpu_custom_call.1} parent=1 // pred_check_branch
      %165 = sbr.rel (0) target = $region33
    $region32: #{tpu_custom_call.1} parent=1 // pred_region
      %167 = vsyncadd [#allocation3], 0
      %s169 = sshll.u32 [#allocation2], 4
      %s170 = int_to_ptr.vmem [resolvable:$true] %s169
      %s171 = sshll.u32 %s7, 4
      %s172 = int_to_ptr.hbm [resolvable:$true] %s171
      %174 = dma.vmem_to_hbm [thread:$0]  %s170, 64, %s172, [#allocation3]
    $region33: #{tpu_custom_call.1} parent=1 // pred_fallthru
      _
    // Predicated region
    $region34: #{tpu_custom_call.1} parent=1 // pred_check
      _
    $region35: #{tpu_custom_call.1} parent=1 // pred_check_branch
      %176 = sbr.rel (0) target = $region37
    $region36: #{tpu_custom_call.1} parent=1 // pred_region
      %178 = dma.done [#allocation3], 64
    $region37: #{tpu_custom_call.1} parent=1 // pred_fallthru
      _
    %179 = vsyncpa [#allocation3], 1

</llo_original>
